<compile_context>
chip_gen: v7x
topology: tpu7x:2x2x1
jax: 0.10.0
libtpu: 0.0.40
codegen_flags: <defaults>
</compile_context>

<pallas_src>
import numpy as np
import jax
import jax.numpy as jnp
from jax.experimental import pallas as pl
from jax.experimental.pallas import tpu as pltpu


# ---------------------------------------------------------------------------
# Tile-size / constant helpers (host side, trace time)
# ---------------------------------------------------------------------------
_MAX_WB = 256           # input-width block -> owb = 128 lane-dense output blocks
_TILE_ELEMS = 1 << 18   # ~1 MiB f32 input tile per grid step


def _pick_block(total, max_size, multiple):
    """Largest divisor of `total` that is <= max_size and a multiple of `multiple`.
    Falls back to `total` itself (a full-extent block is always legal)."""
    cap = min(max_size, total)
    for cand in range(cap, 0, -1):
        if total % cand == 0 and cand % multiple == 0:
            return cand
    return total


def _fwd_col_matrix(wb):
    """(wb, 2*owb) fused [plus | minus] column-pair combine with 0.25 folded in."""
    owb = wb // 2
    m = np.zeros((wb, 2 * owb), np.float32)
    j = np.arange(owb)
    m[2 * j, j] = 0.25
    m[2 * j + 1, j] = 0.25
    m[2 * j, owb + j] = 0.25
    m[2 * j + 1, owb + j] = -0.25
    return m


def _inv_col_matrices(wb):
    """(owb, wb) transposed plus / minus column-expansion matrices (entries +-1)."""
    owb = wb // 2
    mpt = np.zeros((owb, wb), np.float32)
    mmt = np.zeros((owb, wb), np.float32)
    j = np.arange(owb)
    mpt[j, 2 * j] = 1.0
    mpt[j, 2 * j + 1] = 1.0
    mmt[j, 2 * j] = 1.0
    mmt[j, 2 * j + 1] = -1.0
    return mpt, mmt


# ---------------------------------------------------------------------------
# Kernels
# ---------------------------------------------------------------------------
def _make_fwd_kernel(rh, owb):
    def kernel(x_ref, m_ref, o_ref):
        # x_ref: (2*rh, wb) rows of the flattened (C*H) axis; row pairs (2i, 2i+1)
        #        always belong to the same channel because H is even.
        xe = x_ref[pl.ds(0, rh, stride=2), :].astype(jnp.float32)   # even rows (strided vld)
        xo = x_ref[pl.ds(1, rh, stride=2), :].astype(jnp.float32)   # odd rows
        s = xe + xo                                                 # row-pair sums  (VPU)
        d = xe - xo                                                 # row-pair diffs (VPU)
        m = m_ref[...]                                              # (wb, 2*owb), 0.25 folded
        s2 = jnp.dot(s, m, preferred_element_type=jnp.float32)      # (rh, 2*owb)  MXU
        d2 = jnp.dot(d, m, preferred_element_type=jnp.float32)      # (rh, 2*owb)  MXU
        dt = o_ref.dtype
        o_ref[0] = s2[:, :owb].astype(dt)       # (a+b+c+d)/4
        o_ref[1] = s2[:, owb:].astype(dt)       # (a-b+c-d)/4
        o_ref[2] = d2[:, :owb].astype(dt)       # (a+b-c-d)/4
        o_ref[3] = d2[:, owb:].astype(dt)       # (a-b-c+d)/4
    return kernel


def _make_inv_kernel(rh):
    def kernel(y_ref, mpt_ref, mmt_ref, o_ref):
        # y_ref: (4, rh, owb) quadrants; o_ref: (2*rh, wb)
        y0 = y_ref[0].astype(jnp.float32)
        y1 = y_ref[1].astype(jnp.float32)
        y2 = y_ref[2].astype(jnp.float32)
        y3 = y_ref[3].astype(jnp.float32)
        mpt = mpt_ref[...]
        mmt = mmt_ref[...]
        rs = (jnp.dot(y0, mpt, preferred_element_type=jnp.float32) +
              jnp.dot(y1, mmt, preferred_element_type=jnp.float32))   # (rh, wb)
        rd = (jnp.dot(y2, mpt, preferred_element_type=jnp.float32) +
              jnp.dot(y3, mmt, preferred_element_type=jnp.float32))   # (rh, wb)
        dt = o_ref.dtype
        o_ref[pl.ds(0, rh, stride=2), :] = (rs + rd).astype(dt)   # even output rows
        o_ref[pl.ds(1, rh, stride=2), :] = (rs - rd).astype(dt)   # odd output rows
    return kernel


# ---------------------------------------------------------------------------
# Wrappers
# ---------------------------------------------------------------------------
def _haar_forward_impl(x):
    n, c, h, w = x.shape
    assert h % 2 == 0 and w % 2 == 0, "HaarDownsampling needs even spatial dims"
    oh, ow = h // 2, w // 2
    ch = c * h

    wb = _pick_block(w, _MAX_WB, 256)            # width block (full width if small/awkward)
    owb = wb // 2
    rmax = max(16, _TILE_ELEMS // wb)
    r = _pick_block(ch, rmax, 16)                # rows per step over flattened (C*H)
    rh = r // 2

    xf = x.reshape(n, ch, w)                     # free reshape (no data movement)
    m = jnp.asarray(_fwd_col_matrix(wb))

    out = pl.pallas_call(
        _make_fwd_kernel(rh, owb),
        grid=(n, ch // r, w // wb),
        in_specs=[
            pl.BlockSpec((None, r, wb), lambda i, j, l: (i, j, l)),
            pl.BlockSpec((wb, 2 * owb), lambda i, j, l: (0, 0)),   # VMEM-resident constant
        ],
        out_specs=pl.BlockSpec((None, 4, rh, owb), lambda i, j, l: (i, 0, j, l)),
        out_shape=jax.ShapeDtypeStruct((n, 4, c * oh, ow), x.dtype),
        compiler_params=pltpu.CompilerParams(
            dimension_semantics=("parallel", "parallel", "parallel")),
    )(xf, m)
    # (N, 4, C*OH, OW) -> (N, 4C, OH, OW): free reshape; channel order f*C + c matches torch.
    return out.reshape(n, 4 * c, oh, ow)


def _haar_inverse_impl(y):
    n, c4, oh, ow = y.shape
    assert c4 % 4 == 0
    c = c4 // 4
    h, w = 2 * oh, 2 * ow
    ch = c * h

    wb = _pick_block(w, _MAX_WB, 256)
    owb = wb // 2
    rmax = max(16, _TILE_ELEMS // wb)
    r = _pick_block(ch, rmax, 16)
    rh = r // 2

    y4 = y.reshape(n, 4, c * oh, ow)             # free reshape
    mpt, mmt = _inv_col_matrices(wb)

    out = pl.pallas_call(
        _make_inv_kernel(rh),
        grid=(n, ch // r, w // wb),
        in_specs=[
            pl.BlockSpec((None, 4, rh, owb), lambda i, j, l: (i, 0, j, l)),
            pl.BlockSpec((owb, wb), lambda i, j, l: (0, 0)),
            pl.BlockSpec((owb, wb), lambda i, j, l: (0, 0)),
        ],
        out_specs=pl.BlockSpec((None, r, wb), lambda i, j, l: (i, j, l)),
        out_shape=jax.ShapeDtypeStruct((n, ch, w), y.dtype),
        compiler_params=pltpu.CompilerParams(
            dimension_semantics=("parallel", "parallel", "parallel")),
    )(y4, jnp.asarray(mpt), jnp.asarray(mmt))
    return out.reshape(n, c, h, w)               # free reshape


haar_forward = jax.jit(_haar_forward_impl)
haar_inverse = jax.jit(_haar_inverse_impl)


class HaarDownsampling:
    """Mirrors the PyTorch module's forward(x, rev) / jacobian() semantics."""

    def __init__(self, channel_in):
        self.channel_in = channel_in
        self.elements = None
        self.last_jac = None

    def __call__(self, x, rev=False):
        n, c, h, w = x.shape
        self.elements = c * h * w
        if not rev:
            assert c == self.channel_in
            self.last_jac = self.elements / 4 * float(np.log(1.0 / 16.0))
            return haar_forward(x)
        else:
            assert c == 4 * self.channel_in
            self.last_jac = self.elements / 4 * float(np.log(16.0))
            return haar_inverse(x)

    def jacobian(self, x=None, rev=False):
        # Host-side scalar; no kernel needed.
        return self.last_jac


# ---------------------------------------------------------------------------
# Pure-JAX reference (mirrors F.conv2d(..., stride=2, groups=C)/4 + channel reorder)
# ---------------------------------------------------------------------------
def _haar_ref_forward(x):
    a = x[:, :, 0::2, 0::2]
    b = x[:, :, 0::2, 1::2]
    c = x[:, :, 1::2, 0::2]
    d = x[:, :, 1::2, 1::2]
    return jnp.concatenate(
        [a + b + c + d, a - b + c - d, a + b - c - d, a - b - c + d], axis=1) * 0.25


def _haar_ref_inverse(y):
    n, c4, oh, ow = y.shape
    c = c4 // 4
    y5 = y.reshape(n, 4, c, oh, ow)
    y0, y1, y2, y3 = y5[:, 0], y5[:, 1], y5[:, 2], y5[:, 3]
    out = jnp.zeros((n, c, 2 * oh, 2 * ow), jnp.float32)
    out = out.at[:, :, 0::2, 0::2].set(y0 + y1 + y2 + y3)
    out = out.at[:, :, 0::2, 1::2].set(y0 - y1 + y2 - y3)
    out = out.at[:, :, 1::2, 0::2].set(y0 + y1 - y2 - y3)
    out = out.at[:, :, 1::2, 1::2].set(y0 - y1 - y2 + y3)
    return out


if __name__ == "__main__":
    key = jax.random.PRNGKey(0)
    N, C, H, W = 2, 4, 16, 16
    x = jax.random.normal(key, (N, C, H, W), jnp.float32)

    mod = HaarDownsampling(channel_in=C)

    # forward (rev=False)
    y = mod(x, rev=False)
    jax.block_until_ready(y)
    assert y.shape == (N, 4 * C, H // 2, W // 2)
    y_ref = _haar_ref_forward(x)
    err_fwd = float(jnp.max(jnp.abs(y - y_ref)))
    assert err_fwd < 1e-5, f"forward mismatch: {err_fwd}"
    assert mod.jacobian() is not None

    # reverse (rev=True) and exact round-trip
    x_rec = mod(y, rev=True)
    jax.block_until_ready(x_rec)
    assert x_rec.shape == (N, C, H, W)
    err_inv = float(jnp.max(jnp.abs(x_rec - _haar_ref_inverse(y))))
    err_rt = float(jnp.max(jnp.abs(x_rec - x)))
    assert err_inv < 1e-5, f"inverse mismatch: {err_inv}"
    assert err_rt < 1e-5, f"round-trip mismatch: {err_rt}"

    print("KERNEL_OK")
</pallas_src>

<mosaic_0001>
module attributes {stable_mosaic.version = 11 : i64} {
  func.func @kernel(%arg0: i32, %arg1: i32, %arg2: i32, %arg3: memref<1x64x16xf32, #tpu.memory_space<vmem>>, %arg4: memref<16x16xf32, #tpu.memory_space<vmem>>, %arg5: memref<1x4x32x8xf32, #tpu.memory_space<vmem>>) attributes {dimension_semantics = [#tpu.dimension_semantics<parallel>, #tpu.dimension_semantics<parallel>, #tpu.dimension_semantics<parallel>], iteration_bounds = array<i64: 2, 1, 1>, scalar_prefetch = 0 : i64, scratch_operands = 0 : i64, tpu.core_type = #tpu.core_type<tc>, window_params = [{transform_indices = @transform_0, window_bounds = array<i64: 1, 64, 16>}, {pipeline_mode = #tpu.pipeline_mode<synchronous>, transform_indices = @transform_1, window_bounds = array<i64: 16, 16>}, {transform_indices = @transform_2, window_bounds = array<i64: 1, 4, 32, 8>}]} {
    %c0 = arith.constant 0 : index
    %c0_0 = arith.constant 0 : index
    %c0_1 = arith.constant 0 : index
    %0 = tpu.strided_load %arg3[%c0, %c0_0, %c0_1] {strides = array<i32: 1, 2, 1>} : memref<1x64x16xf32, #tpu.memory_space<vmem>>, vector<1x32x16xf32>
    %1 = vector.shape_cast %0 : vector<1x32x16xf32> to vector<32x16xf32>
    %c0_2 = arith.constant 0 : index
    %c1 = arith.constant 1 : index
    %c0_3 = arith.constant 0 : index
    %2 = tpu.strided_load %arg3[%c0_2, %c1, %c0_3] {strides = array<i32: 1, 2, 1>} : memref<1x64x16xf32, #tpu.memory_space<vmem>>, vector<1x32x16xf32>
    %3 = vector.shape_cast %2 : vector<1x32x16xf32> to vector<32x16xf32>
    %4 = arith.addf %1, %3 : vector<32x16xf32>
    %5 = arith.subf %1, %3 : vector<32x16xf32>
    %c0_4 = arith.constant 0 : index
    %c0_5 = arith.constant 0 : index
    %6 = vector.load %arg4[%c0_4, %c0_5] : memref<16x16xf32, #tpu.memory_space<vmem>>, vector<16x16xf32>
    %cst = arith.constant dense<0.000000e+00> : vector<32x16xf32>
    %7 = tpu.matmul %4, %6, %cst {dimension_numbers = #tpu.dot_dimension_numbers<[1], [0], [0], [1], [0, 0, 1, 1], [], []>} : vector<32x16xf32>, vector<16x16xf32>, vector<32x16xf32> -> vector<32x16xf32>
    %cst_6 = arith.constant dense<0.000000e+00> : vector<32x16xf32>
    %8 = tpu.matmul %5, %6, %cst_6 {dimension_numbers = #tpu.dot_dimension_numbers<[1], [0], [0], [1], [0, 0, 1, 1], [], []>} : vector<32x16xf32>, vector<16x16xf32>, vector<32x16xf32> -> vector<32x16xf32>
    %9 = vector.extract_strided_slice %7 {offsets = [0, 0], sizes = [32, 8], strides = [1, 1]} : vector<32x16xf32> to vector<32x8xf32>
    %c0_7 = arith.constant 0 : index
    %c0_8 = arith.constant 0 : index
    %c0_9 = arith.constant 0 : index
    %c0_10 = arith.constant 0 : index
    %10 = vector.load %arg5[%c0_7, %c0_8, %c0_9, %c0_10] : memref<1x4x32x8xf32, #tpu.memory_space<vmem>>, vector<1x1x32x8xf32>
    %11 = vector.shape_cast %10 : vector<1x1x32x8xf32> to vector<32x8xf32>
    %12 = vector.shape_cast %9 : vector<32x8xf32> to vector<1x1x32x8xf32>
    tpu.vector_store %arg5[%c0_7, %c0_8, %c0_9, %c0_10], %12 {strides = array<i32>} : memref<1x4x32x8xf32, #tpu.memory_space<vmem>>, vector<1x1x32x8xf32>,
    %13 = vector.extract_strided_slice %7 {offsets = [0, 8], sizes = [32, 8], strides = [1, 1]} : vector<32x16xf32> to vector<32x8xf32>
    %c0_11 = arith.constant 0 : index
    %c1_12 = arith.constant 1 : index
    %c0_13 = arith.constant 0 : index
    %c0_14 = arith.constant 0 : index
    %14 = vector.load %arg5[%c0_11, %c1_12, %c0_13, %c0_14] : memref<1x4x32x8xf32, #tpu.memory_space<vmem>>, vector<1x1x32x8xf32>
    %15 = vector.shape_cast %14 : vector<1x1x32x8xf32> to vector<32x8xf32>
    %16 = vector.shape_cast %13 : vector<32x8xf32> to vector<1x1x32x8xf32>
    tpu.vector_store %arg5[%c0_11, %c1_12, %c0_13, %c0_14], %16 {strides = array<i32>} : memref<1x4x32x8xf32, #tpu.memory_space<vmem>>, vector<1x1x32x8xf32>,
    %17 = vector.extract_strided_slice %8 {offsets = [0, 0], sizes = [32, 8], strides = [1, 1]} : vector<32x16xf32> to vector<32x8xf32>
    %c0_15 = arith.constant 0 : index
    %c2 = arith.constant 2 : index
    %c0_16 = arith.constant 0 : index
    %c0_17 = arith.constant 0 : index
    %18 = vector.load %arg5[%c0_15, %c2, %c0_16, %c0_17] : memref<1x4x32x8xf32, #tpu.memory_space<vmem>>, vector<1x1x32x8xf32>
    %19 = vector.shape_cast %18 : vector<1x1x32x8xf32> to vector<32x8xf32>
    %20 = vector.shape_cast %17 : vector<32x8xf32> to vector<1x1x32x8xf32>
    tpu.vector_store %arg5[%c0_15, %c2, %c0_16, %c0_17], %20 {strides = array<i32>} : memref<1x4x32x8xf32, #tpu.memory_space<vmem>>, vector<1x1x32x8xf32>,
    %21 = vector.extract_strided_slice %8 {offsets = [0, 8], sizes = [32, 8], strides = [1, 1]} : vector<32x16xf32> to vector<32x8xf32>
    %c0_18 = arith.constant 0 : index
    %c3 = arith.constant 3 : index
    %c0_19 = arith.constant 0 : index
    %c0_20 = arith.constant 0 : index
    %22 = vector.load %arg5[%c0_18, %c3, %c0_19, %c0_20] : memref<1x4x32x8xf32, #tpu.memory_space<vmem>>, vector<1x1x32x8xf32>
    %23 = vector.shape_cast %22 : vector<1x1x32x8xf32> to vector<32x8xf32>
    %24 = vector.shape_cast %21 : vector<32x8xf32> to vector<1x1x32x8xf32>
    tpu.vector_store %arg5[%c0_18, %c3, %c0_19, %c0_20], %24 {strides = array<i32>} : memref<1x4x32x8xf32, #tpu.memory_space<vmem>>, vector<1x1x32x8xf32>,
    return
  }
  func.func @transform_0(%arg0: i32, %arg1: i32, %arg2: i32) -> (i32, i32, i32) {
    %c0_i32 = arith.constant 0 : i32
    return %arg0, %arg1, %arg2 : i32, i32, i32
  }
  func.func @transform_1(%arg0: i32, %arg1: i32, %arg2: i32) -> (i32, i32) {
    %c0_i32 = arith.constant 0 : i32
    %c0_i32_0 = arith.constant 0 : i32
    %c0_i32_1 = arith.constant 0 : i32
    return %c0_i32, %c0_i32_0 : i32, i32
  }
  func.func @transform_2(%arg0: i32, %arg1: i32, %arg2: i32) -> (i32, i32, i32, i32) {
    %c0_i32 = arith.constant 0 : i32
    %c0_i32_0 = arith.constant 0 : i32
    return %arg0, %c0_i32, %arg1, %arg2 : i32, i32, i32, i32
  }
}

</mosaic_0001>

<llo_original>
// kernel: _haar_forward_impl.1
$region0: #{_haar_forward_impl.1}
  #allocation0 [shape = 'u32[]', space=smem, size = 0x4, offset = 0x4, fixed_abs, tag = 'smem constant byte address 0x4 - core index']
  #allocation1 [shape = 'u32[144,128]{1,0:T(1,128)}', space=vmem, size = 0x12000, scoped, tag = 'internal scratch']
  %s0 = inlined_call_operand.hbm [shape: f32[2,64,16], index: 0, kind: input, shape index: {}]
  %s1 = inlined_call_operand.hbm [shape: f32[16,16], index: 1, kind: input, shape index: {}]
  %s2 = inlined_call_operand.vmem [shape: f32[2,4,32,8], index: 2, kind: output, shape index: {}]
  %s3 = sld [smem:[#allocation0]]
  $region49: #{_haar_forward_impl.1} parent=0
    _
  %s5 = ssub.s32 1, %s3
  %s6 = scalar_select 0, %s5, %s3
  $region1: #{_haar_forward_impl.1} parent=0
    #allocation2 [shape = 'u8[65536]{0}', space=vmem, size = 0x10000, scoped, tag = 'input window, operand 0']
    #allocation3 [shape = 's32[2]{0}', space=sflag, size = 0x8, scoped, tag = 'scoped memory for _haar_forward_impl.1']
    #allocation4 [shape = 'u8[8192]{0}', space=vmem, size = 0x2000, scoped, tag = 'input window, operand 1, single buffered']
    #allocation5 [shape = 's32[1]{0}', space=sflag, size = 0x4, scoped, tag = 'scoped memory for _haar_forward_impl.1']
    %7 = vsyncpa [#allocation3], 0
    %s8 = scalar_lea.sflag [#allocation3], 1
    %9 = vsyncpa %s8, 0
    %10 = vsyncpa [#allocation5], 0
    loop: start=0, step=1, limit=4
    $region2: #{_haar_forward_impl.1} parent=1 // loop_pre_header
      _
    $region3: #{_haar_forward_impl.1} parent=1 // loop_header
      %s12 = sphi 0, %s16
      %p13 = scmp.ge.s32.totalorder %s12, 4
      %s19 = sphi 0, %s38
      %s20 = sphi 0, %s34
      %s21 = sphi 0, %s30
      %s22 = sphi 0, %s19
      %s23 = sphi 0, %s20
      %s24 = sphi 0, %s21
      %s25 = sphi 0, %s22
      %s26 = sphi 0, %s23
      %s27 = sphi 0, %s24
      %s45 = sphi 0, %s47
      %s48 = sphi 0, %s45
      %s49 = sphi 0, %s48
      %s65 = sphi 0, %s49
      %s69 = sphi 0, %s69
      %s71 = sphi 0, %s69
      %s72 = sphi 0, %s71
      %s86 = sphi 0, %s72
      %s96 = sphi 0, %s98
      %s99 = sphi 0, %s96
      %s100 = sphi 0, %s99
      %s116 = sphi 0, %s100
    $region4: #{_haar_forward_impl.1} parent=1 // loop_header_branch
      %15 = sbr.rel (%p13) target = $region8
    $region5: #{_haar_forward_impl.1} parent=1 // loop_body
      %s17 = ssub.s32 %s12, 1
      %s18 = ssub.s32 %s12, 2
      %s28 = sadd.s32 1, %s21
      %p29 = scmp.ge.s32.totalorder %s28, 1
      %s30 = scalar_select %p29, 0, %s28
      %s31 = sadd.s32 1, %s20
      %s32 = scalar_select %p29, %s31, %s20
      %p33 = scmp.ge.s32.totalorder %s32, 1
      %s34 = scalar_select %p33, 0, %s32
      %s35 = sadd.s32 1, %s19
      %s36 = scalar_select %p33, %s35, %s19
      %p37 = scmp.ge.s32.totalorder %s36, 2
      %s38 = scalar_select %p37, 0, %s36
      %s39 = ssub.s32 %s19, %s38
      %s40 = ssub.s32 %s20, %s34
      %s41 = sor.u32 %s39, %s40
      %s42 = ssub.s32 %s21, %s30
      %s43 = sor.u32 %s41, %s42
      %p44 = scmp.eq.s32.totalorder %s43, 0
      %s46 = sadd.s32 %s45, 1
      %s47 = scalar_select %p44, %s45, %s46
      %p50 = pneg %p44
      %p51 = scmp.eq.s32.totalorder %s12, 1
      %p52 = por %p50, %p51
      %p53 = scmp.ne.s32.totalorder %s45, %s48
      %p54 = scmp.eq.s32.totalorder %s12, 0
      %p55 = por %p53, %p54
      %p56 = scmp.ne.s32.totalorder %s45, %s48
      %p57 = scmp.eq.s32.totalorder %s17, 1
      %p58 = por %p56, %p57
      %p59 = scmp.ne.s32.totalorder %s48, %s49
      %p60 = scmp.eq.s32.totalorder %s17, 0
      %p61 = por %p59, %p60
      %p62 = scmp.ne.s32.totalorder %s48, %s49
      %p63 = scmp.eq.s32.totalorder %s18, 1
      %p64 = por %p62, %p63
      %p66 = scmp.ne.s32.totalorder %s49, %s65
      %p67 = scmp.eq.s32.totalorder %s18, 0
      %p68 = por %p66, %p67
      %s70 = sadd.s32 %s69, 1
      %p73 = scmp.eq.s32.totalorder %s12, 1
      %p74 = scmp.ne.s32.totalorder %s69, %s71
      %p75 = scmp.eq.s32.totalorder %s12, 0
      %p76 = por %p74, %p75
      %p77 = scmp.ne.s32.totalorder %s69, %s71
      %p78 = scmp.eq.s32.totalorder %s17, 1
      %p79 = por %p77, %p78
      %p80 = scmp.ne.s32.totalorder %s71, %s72
      %p81 = scmp.eq.s32.totalorder %s17, 0
      %p82 = por %p80, %p81
      %p83 = scmp.ne.s32.totalorder %s71, %s72
      %p84 = scmp.eq.s32.totalorder %s18, 1
      %p85 = por %p83, %p84
      %p87 = scmp.ne.s32.totalorder %s72, %s86
      %p88 = scmp.eq.s32.totalorder %s18, 0
      %p89 = por %p87, %p88
      %s90 = ssub.s32 %s19, %s38
      %s91 = ssub.s32 %s20, %s34
      %s92 = sor.u32 %s90, %s91
      %s93 = ssub.s32 %s21, %s30
      %s94 = sor.u32 %s92, %s93
      %p95 = scmp.eq.s32.totalorder %s94, 0
      %s97 = sadd.s32 %s96, 1
      %s98 = scalar_select %p95, %s96, %s97
      %p101 = pneg %p95
      %p102 = scmp.eq.s32.totalorder %s12, 1
      %p103 = por %p101, %p102
      %p104 = scmp.ne.s32.totalorder %s96, %s99
      %p105 = scmp.eq.s32.totalorder %s12, 0
      %p106 = por %p104, %p105
      %p107 = scmp.ne.s32.totalorder %s96, %s99
      %p108 = scmp.eq.s32.totalorder %s17, 1
      %p109 = por %p107, %p108
      %p110 = scmp.ne.s32.totalorder %s99, %s100
      %p111 = scmp.eq.s32.totalorder %s17, 0
      %p112 = por %p110, %p111
      %p113 = scmp.ne.s32.totalorder %s99, %s100
      %p114 = scmp.eq.s32.totalorder %s18, 1
      %p115 = por %p113, %p114
      %p117 = scmp.ne.s32.totalorder %s100, %s116
      %p118 = scmp.eq.s32.totalorder %s18, 0
      %p119 = por %p117, %p118
      %p120 = scmp.le.s32.totalorder 1, %s12
      %p121 = scmp.lt.s32.totalorder %s12, 3
      %p122 = pnand %p120, %p121
      %p123 = pneg %p122
      // Predicated region
      $region9: #{_haar_forward_impl.1} parent=5 // pred_check
        _
      $region10: #{_haar_forward_impl.1} parent=5 // pred_check_branch
        %125 = sbr.rel (%p122) target = $region12
      $region11: #{_haar_forward_impl.1} parent=5 // pred_region
        %s126 = ssub.s32 %s12, 1
        // Predicated region
        $region13: #{_haar_forward_impl.1} parent=11 // pred_check
          %p127 = pneg %p82
        $region14: #{_haar_forward_impl.1} parent=11 // pred_check_branch
          %129 = sbr.rel (%p127) target = $region16
        $region15: #{_haar_forward_impl.1} parent=11 // pred_region
          %s131 = ssub.s32 256, 256
          %132 = vsyncadd [#allocation5], %s131
          %s133 = sshll.u32 [#allocation4], 4
          %s134 = int_to_ptr.vmem [resolvable:$true] %s133
          %139 = dma.hbm_to_vmem [thread:$0]  %s1, 256, %s134, [#allocation5], 128, 128, 8
        $region16: #{_haar_forward_impl.1} parent=11 // pred_fallthru
          _
      $region12: #{_haar_forward_impl.1} parent=5 // pred_fallthru
        _
      %p140 = scmp.lt.s32.totalorder %s12, 2
      // Predicated region
      $region17: #{_haar_forward_impl.1} parent=5 // pred_check
        %p141 = pneg %p140
      $region18: #{_haar_forward_impl.1} parent=5 // pred_check_branch
        %143 = sbr.rel (%p141) target = $region20
      $region19: #{_haar_forward_impl.1} parent=5 // pred_region
        // Predicated region
        $region21: #{_haar_forward_impl.1} parent=19 // pred_check
          %p144 = pneg %p55
        $region22: #{_haar_forward_impl.1} parent=19 // pred_check_branch
          %146 = sbr.rel (%p144) target = $region24
        $region23: #{_haar_forward_impl.1} parent=19 // pred_region
          %s147 = sand.u32 %s45, 1
          %s148 = scalar_lea.sflag [#allocation3], %s147
          %s149 = sand.u32 %s45, 1
          %s150 = smul.addr %s149, 64
          %s151 = scalar_lea.vmem [#allocation2], %s150
          %s152 = smul.u32 8, %s20
          %s154 = ssub.s32 1024, 1024
          %155 = vsyncadd %s148, %s154
          %s156 = sadd.s32 %s21, %s152
          %s157 = smul.addr %s19, 8
          %s158 = sadd.s32 %s156, %s157
          %s159 = smul.addr %s158, 128
          %s160 = scalar_lea.hbm %s0, %s159
          %s161 = sshll.u32 %s151, 4
          %s162 = int_to_ptr.vmem [resolvable:$true] %s161
          %167 = dma.hbm_to_vmem [thread:$0]  %s160, 1024, %s162, %s148, 128, 128, 8
        $region24: #{_haar_forward_impl.1} parent=19 // pred_fallthru
          _
      $region20: #{_haar_forward_impl.1} parent=5 // pred_fallthru
        _
      %p168 = scmp.le.s32.totalorder 1, %s12
      %p169 = scmp.lt.s32.totalorder %s12, 3
      %p170 = pnand %p168, %p169
      %p171 = pneg %p170
      // Predicated region
      $region25: #{_haar_forward_impl.1} parent=5 // pred_check
        _
      $region26: #{_haar_forward_impl.1} parent=5 // pred_check_branch
        %173 = sbr.rel (%p170) target = $region28
      $region27: #{_haar_forward_impl.1} parent=5 // pred_region
        %s174 = ssub.s32 %s12, 1
        %s175 = sand.u32 %s48, 1
        %s176 = scalar_lea.sflag [#allocation3], %s175
        %s177 = sand.u32 %s48, 1
        %s178 = smul.addr %s177, 64
        %s179 = scalar_lea.vmem [#allocation2], %s178
        // Predicated region
        $region29: #{_haar_forward_impl.1} parent=27 // pred_check
          %p180 = pneg %p61
        $region30: #{_haar_forward_impl.1} parent=27 // pred_check_branch
          %182 = sbr.rel (%p180) target = $region32
        $region31: #{_haar_forward_impl.1} parent=27 // pred_region
          %183 = dma.done %s176, 1024
        $region32: #{_haar_forward_impl.1} parent=27 // pred_fallthru
          _
        // Predicated region
        $region33: #{_haar_forward_impl.1} parent=27 // pred_check
          %p184 = pneg %p82
        $region34: #{_haar_forward_impl.1} parent=27 // pred_check_branch
          %186 = sbr.rel (%p184) target = $region36
        $region35: #{_haar_forward_impl.1} parent=27 // pred_region
          %187 = dma.done [#allocation5], 256
        $region36: #{_haar_forward_impl.1} parent=27 // pred_fallthru
          _
        %s188 = sand.u32 %s48, 1
        %s189 = scalar_lea.sflag [#allocation3], %s188
        %s190 = sand.u32 %s48, 1
        %s191 = smul.addr %s190, 64
        %s192 = scalar_lea.vmem [#allocation2], %s191
        %p193 = pneg %p61
        %p194 = pneg %p58
        %p195 = pneg %p82
        %p196 = pneg %p79
        %p197 = pneg %p112
        %p198 = pneg %p109
        %s199 = smul.u32 4, %s23
        %p200 = scmp.lt.s32.totalorder %s22, 1
        %s201 = scalar_select %p200, %s22, 1
        %p202 = scmp.lt.s32.totalorder %s199, 3
        %s203 = scalar_select %p202, %s199, 3
        %p204 = scmp.lt.s32.totalorder %s24, 0
        %s205 = scalar_select %p204, %s24, 0
        %s206 = sadd.s32 %s205, %s203
        %s207 = smul.addr %s201, 16
        %s208 = sadd.s32 %s206, %s207
        %s209 = smul.addr %s208, 8
        %s210 = scalar_lea.vmem %s2, %s209
        %s211 = smul.u32 8, %s23
        %s212 = smul.u32 4, %s23
        %p213 = scmp.lt.s32.totalorder %s22, 1
        %s214 = scalar_select %p213, %s22, 1
        %p215 = scmp.lt.s32.totalorder %s212, 3
        %s216 = scalar_select %p215, %s212, 3
        %p217 = scmp.lt.s32.totalorder %s24, 0
        %s218 = scalar_select %p217, %s24, 0
        %s219 = sadd.s32 %s218, %s216
        %s220 = smul.addr %s214, 16
        %s221 = sadd.s32 %s219, %s220
        %s222 = smul.addr %s221, 8
        %s223 = scalar_lea.vmem %s2, %s222
        %s224 = smul.u32 4, %s23
        %v225 = vld [vmem:[%s179] ss:$2 sm:$0xff]
        %s226 = scalar_lea.vmem %s179, 16 [#allocation2]
        %v227 = vld [vmem:[%s226] ss:$2 sm:$0xff]
        %s228 = scalar_lea.vmem %s179, 32 [#allocation2]
        %v229 = vld [vmem:[%s228] ss:$2 sm:$0xff]
        %s230 = scalar_lea.vmem %s179, 48 [#allocation2]
        %v231 = vld [vmem:[%s230] ss:$2 sm:$0xff]
        %s232 = scalar_lea.vmem %s179, 1 [#allocation2]
        %v233 = vld [vmem:[%s232] ss:$2 sm:$0xff]
        %s234 = scalar_lea.vmem %s179, 17 [#allocation2]
        %v235 = vld [vmem:[%s234] ss:$2 sm:$0xff]
        %s236 = scalar_lea.vmem %s179, 33 [#allocation2]
        %v237 = vld [vmem:[%s236] ss:$2 sm:$0xff]
        %s238 = scalar_lea.vmem %s179, 49 [#allocation2]
        %v239 = vld [vmem:[%s238] ss:$2 sm:$0xff]
        %v240 = vadd.f32 %v225, %v233
        %v241 = vadd.f32 %v227, %v235
        %v242 = vadd.f32 %v229, %v237
        %v243 = vadd.f32 %v231, %v239
        %v244 = vsub.f32 %v225, %v233
        %v245 = vsub.f32 %v227, %v235
        %v246 = vsub.f32 %v229, %v237
        %v247 = vsub.f32 %v231, %v239
        %v248 = vld [vmem:[#allocation4] sm:$0xff]
        %v249 = vld [vmem:[#allocation4 + $0x8] sm:$0xff]
        %vm250 = vcmask 130048
        %v252 = vsel %vm250, %v240, 0
        %v255 = vsel %vm250, %v241, 0
        %v258 = vsel %vm250, %v242, 0
        %v261 = vsel %vm250, %v243, 0
        %263 = vmatprep.subr.mxu0 0.0
        %264 = vmatpush1.msra.mxu0 %v248
        %265 = vmatprep.subr.mxu0 0.0
        %266 = vmatpush1.msra.mxu0 %v249
        %267 = vmatprep.subr.mxu0 0.0
        %268 = vmatpush1.msra.mxu0 0.0
        %269 = vmatprep.subr.mxu0 0.0
        %270 = vmatpush1.msra.mxu0 0.0
        %271 = vmatprep.subr.mxu0 0.0
        %272 = vmatpush1.msra.mxu0 0.0
        %273 = vmatprep.subr.mxu0 0.0
        %274 = vmatpush1.msra.mxu0 0.0
        %275 = vmatprep.subr.mxu0 0.0
        %276 = vmatpush1.msra.mxu0 0.0
        %277 = vmatprep.subr.mxu0 0.0
        %278 = vmatpush1.msra.mxu0 0.0
        %279 = vmatprep.subr.mxu0 0.0
        %280 = vmatpush1.msra.mxu0 0.0
        %281 = vmatprep.subr.mxu0 0.0
        %282 = vmatpush1.msra.mxu0 0.0
        %283 = vmatprep.subr.mxu0 0.0
        %284 = vmatpush1.msra.mxu0 0.0
        %285 = vmatprep.subr.mxu0 0.0
        %286 = vmatpush1.msra.mxu0 0.0
        %287 = vmatprep.subr.mxu0 0.0
        %288 = vmatpush1.msra.mxu0 0.0
        %289 = vmatprep.subr.mxu0 0.0
        %290 = vmatpush1.msra.mxu0 0.0
        %291 = vmatprep.subr.mxu0 0.0
        %292 = vmatpush1.msra.mxu0 0.0
        %293 = vmatprep.subr.mxu0 0.0
        %294 = vmatpush1.msra.mxu0 0.0
        %295 = vmatprep.subr.mxu0 0.0
        %296 = vmatpush1.msra.mxu0 0.0
        %297 = vmatprep.subr.mxu0 0.0
        %298 = vmatpush1.msra.mxu0 0.0
        %299 = vmatprep.subr.mxu0 0.0
        %300 = vmatpush1.msra.mxu0 0.0
        %301 = vmatprep.subr.mxu0 0.0
        %302 = vmatpush1.msra.mxu0 0.0
        %303 = vmatprep.subr.mxu0 0.0
        %304 = vmatpush1.msra.mxu0 0.0
        %305 = vmatprep.subr.mxu0 0.0
        %306 = vmatpush1.msra.mxu0 0.0
        %307 = vmatprep.subr.mxu0 0.0
        %308 = vmatpush1.msra.mxu0 0.0
        %309 = vmatprep.subr.mxu0 0.0
        %310 = vmatpush1.msra.mxu0 0.0
        %311 = vmatprep.subr.mxu0 0.0
        %312 = vmatpush1.msra.mxu0 0.0
        %313 = vmatprep.subr.mxu0 0.0
        %314 = vmatpush1.msra.mxu0 0.0
        %315 = vmatprep.subr.mxu0 0.0
        %316 = vmatpush1.msra.mxu0 0.0
        %317 = vmatprep.subr.mxu0 0.0
        %318 = vmatpush1.msra.mxu0 0.0
        %319 = vmatprep.subr.mxu0 0.0
        %320 = vmatpush1.msra.mxu0 0.0
        %321 = vmatprep.subr.mxu0 0.0
        %322 = vmatpush1.msra.mxu0 0.0
        %323 = vmatprep.subr.mxu0 0.0
        %324 = vmatpush1.msra.mxu0 0.0
        %325 = vmatprep.subr.mxu0 0.0
        %326 = vmatpush1.msra.mxu0 0.0
        %327 = vmatprep.mubr.f32.mxu0 0.0
        %328 = vmatmul.mubr.f32.gmra.mrb[0].mxu0 %v252
        %v329 = vpop.f32.mrb[0].mxu0
        %v330 = vadd.f32 0.0, %v329
        %v331 = vpop.f32.mrb[0].mxu0
        %332 = vmatprep.mubr.f32.mxu0 0.0
        %333 = vmatmul.mubr.f32.gmra.mrb[0].mxu0 %v255
        %v334 = vpop.f32.mrb[0].mxu0
        %v335 = vadd.f32 0.0, %v334
        %v336 = vpop.f32.mrb[0].mxu0
        %337 = vmatprep.mubr.f32.mxu0 0.0
        %338 = vmatmul.mubr.f32.gmra.mrb[0].mxu0 %v258
        %v339 = vpop.f32.mrb[0].mxu0
        %v340 = vadd.f32 0.0, %v339
        %v341 = vpop.f32.mrb[0].mxu0
        %342 = vmatprep.mubr.f32.mxu0 0.0
        %343 = vmatmul.mubr.f32.gmra.mrb[0].mxu0 %v261
        %v344 = vpop.f32.mrb[0].mxu0
        %v345 = vadd.f32 0.0, %v344
        %v346 = vpop.f32.mrb[0].mxu0
        %347 = vdwg.mxu0
        %v349 = vsel %vm250, %v244, 0
        %v352 = vsel %vm250, %v245, 0
        %v355 = vsel %vm250, %v246, 0
        %v358 = vsel %vm250, %v247, 0
        %360 = vmatprep.subr.mxu0 0.0
        %361 = vmatpush1.msra.mxu0 %v248
        %362 = vmatprep.subr.mxu0 0.0
        %363 = vmatpush1.msra.mxu0 %v249
        %364 = vmatprep.subr.mxu0 0.0
        %365 = vmatpush1.msra.mxu0 0.0
        %366 = vmatprep.subr.mxu0 0.0
        %367 = vmatpush1.msra.mxu0 0.0
        %368 = vmatprep.subr.mxu0 0.0
        %369 = vmatpush1.msra.mxu0 0.0
        %370 = vmatprep.subr.mxu0 0.0
        %371 = vmatpush1.msra.mxu0 0.0
        %372 = vmatprep.subr.mxu0 0.0
        %373 = vmatpush1.msra.mxu0 0.0
        %374 = vmatprep.subr.mxu0 0.0
        %375 = vmatpush1.msra.mxu0 0.0
        %376 = vmatprep.subr.mxu0 0.0
        %377 = vmatpush1.msra.mxu0 0.0
        %378 = vmatprep.subr.mxu0 0.0
        %379 = vmatpush1.msra.mxu0 0.0
        %380 = vmatprep.subr.mxu0 0.0
        %381 = vmatpush1.msra.mxu0 0.0
        %382 = vmatprep.subr.mxu0 0.0
        %383 = vmatpush1.msra.mxu0 0.0
        %384 = vmatprep.subr.mxu0 0.0
        %385 = vmatpush1.msra.mxu0 0.0
        %386 = vmatprep.subr.mxu0 0.0
        %387 = vmatpush1.msra.mxu0 0.0
        %388 = vmatprep.subr.mxu0 0.0
        %389 = vmatpush1.msra.mxu0 0.0
        %390 = vmatprep.subr.mxu0 0.0
        %391 = vmatpush1.msra.mxu0 0.0
        %392 = vmatprep.subr.mxu0 0.0
        %393 = vmatpush1.msra.mxu0 0.0
        %394 = vmatprep.subr.mxu0 0.0
        %395 = vmatpush1.msra.mxu0 0.0
        %396 = vmatprep.subr.mxu0 0.0
        %397 = vmatpush1.msra.mxu0 0.0
        %398 = vmatprep.subr.mxu0 0.0
        %399 = vmatpush1.msra.mxu0 0.0
        %400 = vmatprep.subr.mxu0 0.0
        %401 = vmatpush1.msra.mxu0 0.0
        %402 = vmatprep.subr.mxu0 0.0
        %403 = vmatpush1.msra.mxu0 0.0
        %404 = vmatprep.subr.mxu0 0.0
        %405 = vmatpush1.msra.mxu0 0.0
        %406 = vmatprep.subr.mxu0 0.0
        %407 = vmatpush1.msra.mxu0 0.0
        %408 = vmatprep.subr.mxu0 0.0
        %409 = vmatpush1.msra.mxu0 0.0
        %410 = vmatprep.subr.mxu0 0.0
        %411 = vmatpush1.msra.mxu0 0.0
        %412 = vmatprep.subr.mxu0 0.0
        %413 = vmatpush1.msra.mxu0 0.0
        %414 = vmatprep.subr.mxu0 0.0
        %415 = vmatpush1.msra.mxu0 0.0
        %416 = vmatprep.subr.mxu0 0.0
        %417 = vmatpush1.msra.mxu0 0.0
        %418 = vmatprep.subr.mxu0 0.0
        %419 = vmatpush1.msra.mxu0 0.0
        %420 = vmatprep.subr.mxu0 0.0
        %421 = vmatpush1.msra.mxu0 0.0
        %422 = vmatprep.subr.mxu0 0.0
        %423 = vmatpush1.msra.mxu0 0.0
        %424 = vmatprep.mubr.f32.mxu0 0.0
        %425 = vmatmul.mubr.f32.gmra.mrb[0].mxu0 %v349
        %v426 = vpop.f32.mrb[0].mxu0
        %v427 = vadd.f32 0.0, %v426
        %v428 = vpop.f32.mrb[0].mxu0
        %429 = vmatprep.mubr.f32.mxu0 0.0
        %430 = vmatmul.mubr.f32.gmra.mrb[0].mxu0 %v352
        %v431 = vpop.f32.mrb[0].mxu0
        %v432 = vadd.f32 0.0, %v431
        %v433 = vpop.f32.mrb[0].mxu0
        %434 = vmatprep.mubr.f32.mxu0 0.0
        %435 = vmatmul.mubr.f32.gmra.mrb[0].mxu0 %v355
        %v436 = vpop.f32.mrb[0].mxu0
        %v437 = vadd.f32 0.0, %v436
        %v438 = vpop.f32.mrb[0].mxu0
        %439 = vmatprep.mubr.f32.mxu0 0.0
        %440 = vmatmul.mubr.f32.gmra.mrb[0].mxu0 %v358
        %v441 = vpop.f32.mrb[0].mxu0
        %v442 = vadd.f32 0.0, %v441
        %v443 = vpop.f32.mrb[0].mxu0
        %444 = vdwg.mxu0
        %vm445 = vcmask 64512
        %446 = vst.msk [vmem:[%s223] sm:$0xff] %vm445, %v330
        %447 = vst.msk [vmem:[%s223 + $0x8] sm:$0xff] %vm445, %v335
        %448 = vst.msk [vmem:[%s223 + $0x10] sm:$0xff] %vm445, %v340
        %449 = vst.msk [vmem:[%s223 + $0x18] sm:$0xff] %vm445, %v345
        %454 = vrot.lane.b32.xlu0 %v330, 120
        %v455 = vpop.permute.xlu0 %454
        %456 = vrot.lane.b32.xlu0 %v335, 120
        %v457 = vpop.permute.xlu0 %456
        %458 = vrot.lane.b32.xlu0 %v340, 120
        %v459 = vpop.permute.xlu0 %458
        %460 = vrot.lane.b32.xlu0 %v345, 120
        %v461 = vpop.permute.xlu0 %460
        %s466 = scalar_lea.vmem %s223, 32
        %467 = vst.msk [vmem:[%s466] sm:$0xff] %vm445, %v455
        %468 = vst.msk [vmem:[%s466 + $0x8] sm:$0xff] %vm445, %v457
        %469 = vst.msk [vmem:[%s466 + $0x10] sm:$0xff] %vm445, %v459
        %470 = vst.msk [vmem:[%s466 + $0x18] sm:$0xff] %vm445, %v461
        %s471 = scalar_lea.vmem %s223, 64
        %472 = vst.msk [vmem:[%s471] sm:$0xff] %vm445, %v427
        %473 = vst.msk [vmem:[%s471 + $0x8] sm:$0xff] %vm445, %v432
        %474 = vst.msk [vmem:[%s471 + $0x10] sm:$0xff] %vm445, %v437
        %475 = vst.msk [vmem:[%s471 + $0x18] sm:$0xff] %vm445, %v442
        %480 = vrot.lane.b32.xlu0 %v427, 120
        %v481 = vpop.permute.xlu0 %480
        %482 = vrot.lane.b32.xlu0 %v432, 120
        %v483 = vpop.permute.xlu0 %482
        %484 = vrot.lane.b32.xlu0 %v437, 120
        %v485 = vpop.permute.xlu0 %484
        %486 = vrot.lane.b32.xlu0 %v442, 120
        %v487 = vpop.permute.xlu0 %486
        %s492 = scalar_lea.vmem %s223, 96
        %493 = vst.msk [vmem:[%s492] sm:$0xff] %vm445, %v481
        %494 = vst.msk [vmem:[%s492 + $0x8] sm:$0xff] %vm445, %v483
        %495 = vst.msk [vmem:[%s492 + $0x10] sm:$0xff] %vm445, %v485
        %496 = vst.msk [vmem:[%s492 + $0x18] sm:$0xff] %vm445, %v487
        %s497 = smul.u32 4, %s23
        %p498 = scmp.lt.s32.totalorder %s22, 1
        %s499 = scalar_select %p498, %s22, 1
        %p500 = scmp.lt.s32.totalorder %s497, 3
        %s501 = scalar_select %p500, %s497, 3
        %p502 = scmp.lt.s32.totalorder %s24, 0
        %s503 = scalar_select %p502, %s24, 0
        %s504 = sadd.s32 %s503, %s501
        %s505 = smul.addr %s499, 16
        %s506 = sadd.s32 %s504, %s505
        %s507 = smul.addr %s506, 8
        %s508 = scalar_lea.vmem %s2, %s507
        // Predicated region
        $region37: #{_haar_forward_impl.1} parent=27 // pred_check
          %p509 = pneg %p109
        $region38: #{_haar_forward_impl.1} parent=27 // pred_check_branch
          %511 = sbr.rel (%p509) target = $region40
        $region39: #{_haar_forward_impl.1} parent=27 // pred_region
          %s512 = smul.u32 4, %s23
        $region40: #{_haar_forward_impl.1} parent=27 // pred_fallthru
          _
      $region28: #{_haar_forward_impl.1} parent=5 // pred_fallthru
        _
      %p513 = scmp.le.s32.totalorder 2, %s12
      // Predicated region
      $region41: #{_haar_forward_impl.1} parent=5 // pred_check
        %p514 = pneg %p513
      $region42: #{_haar_forward_impl.1} parent=5 // pred_check_branch
        %516 = sbr.rel (%p514) target = $region44
      $region43: #{_haar_forward_impl.1} parent=5 // pred_region
        %s517 = ssub.s32 %s12, 2
        // Predicated region
        $region45: #{_haar_forward_impl.1} parent=43 // pred_check
          %p518 = pneg %p115
        $region46: #{_haar_forward_impl.1} parent=43 // pred_check_branch
          %520 = sbr.rel (%p518) target = $region48
        $region47: #{_haar_forward_impl.1} parent=43 // pred_region
          %s521 = smul.u32 4, %s26
          %p522 = scmp.lt.s32.totalorder %s25, 1
          %s523 = scalar_select %p522, %s25, 1
          %p524 = scmp.lt.s32.totalorder %s521, 3
          %s525 = scalar_select %p524, %s521, 3
          %p526 = scmp.lt.s32.totalorder %s27, 0
          %s527 = scalar_select %p526, %s27, 0
          %s528 = sadd.s32 %s527, %s525
          %s529 = smul.addr %s523, 16
          %s530 = sadd.s32 %s528, %s529
          %s531 = smul.addr %s530, 8
          %s532 = scalar_lea.vmem %s2, %s531
        $region48: #{_haar_forward_impl.1} parent=43 // pred_fallthru
          _
      $region44: #{_haar_forward_impl.1} parent=5 // pred_fallthru
        _
    $region6: #{_haar_forward_impl.1} parent=1 // loop_footer
      %s16 = sadd.s32 1, %s12
    $region7: #{_haar_forward_impl.1} parent=1 // loop_footer_branch
      %11 = sbr.rel target = $region3
    $region8: #{_haar_forward_impl.1} parent=1 // loop_exit
      _
    %533 = vsyncpa [#allocation3], 1
    %s534 = scalar_lea.sflag [#allocation3], 1
    %535 = vsyncpa %s534, 1
    %536 = vsyncpa [#allocation5], 1

</llo_original>
